<compile_context>
chip_gen: v7x
topology: tpu7x:2x2x1
jax: 0.10.0
libtpu: 0.0.40
codegen_flags: <defaults>
</compile_context>

<pallas_src>
import jax
import jax.numpy as jnp
from jax.experimental import pallas as pl
from jax.experimental.pallas import tpu as pltpu


def _round_up(x, m):
    return (x + m - 1) // m * m


def _pick_tile(hw, target=2048):
    """Largest divisor of hw that is <= target (prefer sublane multiples of 8)."""
    if hw <= target:
        return hw
    for t in range(target, 7, -1):
        if hw % t == 0 and t % 8 == 0:
            return t
    for t in range(target, 0, -1):
        if hw % t == 0:
            return t
    return hw


def _ffm_pool_kernel(fsp_ref, fcp_ref, w0a_ref, w0b_ref, scale_ref, bias_ref,
                     sum_ref):
    # fsp_ref: (tile, C1) bf16    fcp_ref: (tile, C2) bf16
    # w0a_ref: (C1, Cp)  bf16     w0b_ref: (C2, Cp)  bf16
    # scale_ref, bias_ref: (1, Cp) f32 (folded eval-mode BN)
    # sum_ref: (1, Cp) f32 output block, resident across the HW-tile axis.
    t = pl.program_id(1)

    conv = jnp.dot(fsp_ref[...], w0a_ref[...], preferred_element_type=jnp.float32)
    conv = conv + jnp.dot(fcp_ref[...], w0b_ref[...],
                          preferred_element_type=jnp.float32)
    feat = jnp.maximum(conv * scale_ref[...] + bias_ref[...], 0.0)

    @pl.when(t == 0)
    def _():
        sum_ref[...] = jnp.zeros_like(sum_ref)

    sum_ref[...] += jnp.sum(feat, axis=0, keepdims=True)


def _ffm_apply_kernel(fsp_ref, fcp_ref, w0a_ref, w0b_ref, scale_ref, bias_ref,
                      atten_ref, o_ref):
    # atten_ref: (1, Cp) f32 holding (1 + sigmoid(attention)), so that
    # feat*atten + feat collapses to a single multiply.
    conv = jnp.dot(fsp_ref[...], w0a_ref[...], preferred_element_type=jnp.float32)
    conv = conv + jnp.dot(fcp_ref[...], w0b_ref[...],
                          preferred_element_type=jnp.float32)
    feat = jnp.maximum(conv * scale_ref[...] + bias_ref[...], 0.0)
    o_ref[...] = (feat * atten_ref[...]).astype(o_ref.dtype)


def _ffm_channels_last(fsp_l, fcp_l, params, *, tile_hw=None):
    """Core FFM on channels-last, spatially-flattened inputs (N, HW, C)."""
    N, HW, C1 = fsp_l.shape
    _, _, C2 = fcp_l.shape
    Cin = C1 + C2

    w0 = params["w_convblk"]            # (Cout, Cin) 1x1 conv weight
    Cout = w0.shape[0]
    gamma, beta = params["bn_gamma"], params["bn_beta"]
    mean, var = params["bn_mean"], params["bn_var"]
    eps = params["bn_eps"]
    w1, w2 = params["w1"], params["w2"]  # (Cmid, Cout), (Cout, Cmid)

    # Pad Cout to a lane-dense multiple of 128 (no-op when Cout % 128 == 0,
    # e.g. the production Cout=256).
    Cp = _round_up(Cout, 128)
    pad = Cp - Cout

    # Fold eval-mode BN into per-channel scale/bias (padded channels -> 0).
    scale = gamma / jnp.sqrt(var + eps)
    bias = beta - mean * scale
    scale_p = jnp.pad(scale, (0, pad)).reshape(1, Cp).astype(jnp.float32)
    bias_p = jnp.pad(bias, (0, pad)).reshape(1, Cp).astype(jnp.float32)

    # Split the 1x1 conv weight so the channel concat never hits HBM:
    #   conv(cat[fsp, fcp]) == fsp @ w0[:, :C1].T + fcp @ w0[:, C1:].T
    w0a = jnp.pad(jnp.transpose(w0[:, :C1]), ((0, 0), (0, pad))).astype(jnp.bfloat16)
    w0b = jnp.pad(jnp.transpose(w0[:, C1:]), ((0, 0), (0, pad))).astype(jnp.bfloat16)

    fsp_b = fsp_l.astype(jnp.bfloat16)
    fcp_b = fcp_l.astype(jnp.bfloat16)

    tile = tile_hw or _pick_tile(HW)
    assert HW % tile == 0, (HW, tile)
    T = HW // tile

    cparams = pltpu.CompilerParams
    flops = 2 * N * HW * Cin * Cp
    in_bytes = N * HW * (C1 + C2) * 2 + Cin * Cp * 2 + 2 * Cp * 4

    # ---- Pass 1: per-batch channel sums of feat (global average pool). ----
    sums = pl.pallas_call(
        _ffm_pool_kernel,
        out_shape=jax.ShapeDtypeStruct((N, 1, Cp), jnp.float32),
        grid_spec=pltpu.PrefetchScalarGridSpec(
            num_scalar_prefetch=0,
            grid=(N, T),
            in_specs=[
                pl.BlockSpec((None, tile, C1), lambda n, t: (n, t, 0)),
                pl.BlockSpec((None, tile, C2), lambda n, t: (n, t, 0)),
                pl.BlockSpec((C1, Cp), lambda n, t: (0, 0)),
                pl.BlockSpec((C2, Cp), lambda n, t: (0, 0)),
                pl.BlockSpec((1, Cp), lambda n, t: (0, 0)),
                pl.BlockSpec((1, Cp), lambda n, t: (0, 0)),
            ],
            out_specs=pl.BlockSpec((None, 1, Cp), lambda n, t: (n, 0, 0)),
        ),
        compiler_params=cparams(
            dimension_semantics=("parallel", "arbitrary"),
            vmem_limit_bytes=32 * 1024 * 1024),
        cost_estimate=pl.CostEstimate(
            flops=flops, transcendentals=0,
            bytes_accessed=in_bytes + N * Cp * 4),
    )(fsp_b, fcp_b, w0a, w0b, scale_p, bias_p)

    # ---- Tiny attention MLP (1x1 convs on (N, Cout)) in plain JAX. ----
    pooled = sums[:, 0, :Cout] / float(HW)                       # (N, Cout)
    a1 = jax.nn.relu(pooled @ jnp.transpose(w1).astype(jnp.float32))
    a2 = a1 @ jnp.transpose(w2).astype(jnp.float32)              # (N, Cout)
    atten1p = 1.0 + jax.nn.sigmoid(a2)                           # feat*a + feat
    atten1p = jnp.pad(atten1p, ((0, 0), (0, pad)))
    atten1p = atten1p.reshape(N, 1, Cp).astype(jnp.float32)

    # ---- Pass 2: recompute feat tiles, scale by (1 + atten), write out. ----
    out = pl.pallas_call(
        _ffm_apply_kernel,
        out_shape=jax.ShapeDtypeStruct((N, HW, Cp), jnp.float32),
        grid_spec=pltpu.PrefetchScalarGridSpec(
            num_scalar_prefetch=0,
            grid=(N, T),
            in_specs=[
                pl.BlockSpec((None, tile, C1), lambda n, t: (n, t, 0)),
                pl.BlockSpec((None, tile, C2), lambda n, t: (n, t, 0)),
                pl.BlockSpec((C1, Cp), lambda n, t: (0, 0)),
                pl.BlockSpec((C2, Cp), lambda n, t: (0, 0)),
                pl.BlockSpec((1, Cp), lambda n, t: (0, 0)),
                pl.BlockSpec((1, Cp), lambda n, t: (0, 0)),
                pl.BlockSpec((None, 1, Cp), lambda n, t: (n, 0, 0)),
            ],
            out_specs=pl.BlockSpec((None, tile, Cp), lambda n, t: (n, t, 0)),
        ),
        compiler_params=cparams(
            dimension_semantics=("parallel", "parallel"),
            vmem_limit_bytes=32 * 1024 * 1024),
        cost_estimate=pl.CostEstimate(
            flops=flops, transcendentals=0,
            bytes_accessed=in_bytes + N * Cp * 4 + N * HW * Cp * 4),
    )(fsp_b, fcp_b, w0a, w0b, scale_p, bias_p, atten1p)

    return out[:, :, :Cout]   # drop lane padding (no-op when Cout % 128 == 0)


def feature_fusion_module(fsp, fcp, params):
    """fsp, fcp: NCHW float32. Returns NCHW float32 (N, out_chan, H, W)."""
    N, C1, H, W = fsp.shape
    _, C2, _, _ = fcp.shape
    HW = H * W
    # NCHW -> channels-last, spatially flattened (kept for spec fidelity; if
    # the surrounding model runs channels-last, call _ffm_channels_last
    # directly and skip these full-HBM-pass transposes).
    fsp_l = jnp.transpose(fsp, (0, 2, 3, 1)).reshape(N, HW, C1)
    fcp_l = jnp.transpose(fcp, (0, 2, 3, 1)).reshape(N, HW, C2)
    out_l = _ffm_channels_last(fsp_l, fcp_l, params)
    Cout = out_l.shape[-1]
    return jnp.transpose(out_l.reshape(N, H, W, Cout), (0, 3, 1, 2))


def _reference(fsp, fcp, params):
    """Pure-JAX f32 reference matching the PyTorch forward (eval-mode BN)."""
    x = jnp.concatenate([fsp, fcp], axis=1)                       # (N, Cin, H, W)
    w0 = params["w_convblk"]                                      # (Cout, Cin)
    conv = jnp.einsum("nchw,oc->nohw", x, w0)
    scale = params["bn_gamma"] / jnp.sqrt(params["bn_var"] + params["bn_eps"])
    bias = params["bn_beta"] - params["bn_mean"] * scale
    feat = jax.nn.relu(conv * scale[None, :, None, None] + bias[None, :, None, None])
    atten = jnp.mean(feat, axis=(2, 3), keepdims=True)            # (N, Cout, 1, 1)
    atten = jax.nn.relu(jnp.einsum("nchw,oc->nohw", atten, params["w1"]))
    atten = jax.nn.sigmoid(jnp.einsum("nchw,oc->nohw", atten, params["w2"]))
    return feat * atten + feat


def _init_params(key, in_chan, out_chan):
    mid = out_chan // 4
    k0, k1, k2, k3, k4 = jax.random.split(key, 5)
    return {
        "w_convblk": jax.random.normal(k0, (out_chan, in_chan), jnp.float32) * 0.1,
        "bn_gamma": 1.0 + 0.05 * jax.random.normal(k1, (out_chan,), jnp.float32),
        "bn_beta": 0.05 * jax.random.normal(k2, (out_chan,), jnp.float32),
        "bn_mean": 0.1 * jax.random.normal(k3, (out_chan,), jnp.float32),
        "bn_var": jnp.abs(jax.random.normal(k4, (out_chan,), jnp.float32)) + 0.5,
        "bn_eps": 1e-5,
        "w1": jax.random.normal(jax.random.fold_in(key, 10),
                                (mid, out_chan), jnp.float32) * 0.2,
        "w2": jax.random.normal(jax.random.fold_in(key, 11),
                                (out_chan, mid), jnp.float32) * 0.2,
    }


if __name__ == "__main__":
    key = jax.random.PRNGKey(0)
    N, C_sp, C_cp, H, W = 2, 8, 8, 16, 16
    in_chan, out_chan = C_sp + C_cp, 16

    k_fsp, k_fcp, k_param = jax.random.split(key, 3)
    fsp = jax.random.normal(k_fsp, (N, C_sp, H, W), jnp.float32)
    fcp = jax.random.normal(k_fcp, (N, C_cp, H, W), jnp.float32)
    params = _init_params(k_param, in_chan, out_chan)

    out = feature_fusion_module(fsp, fcp, params)
    out = jax.block_until_ready(out)

    ref = _reference(fsp, fcp, params)
    assert out.shape == (N, out_chan, H, W), out.shape
    # bf16 matmul operands (f32 accumulation) -> loosened tolerance vs f32 ref.
    max_err = float(jnp.max(jnp.abs(out - ref)))
    assert jnp.allclose(out, ref, atol=3e-2, rtol=3e-2), max_err

    print("KERNEL_OK")
</pallas_src>

<mosaic_0001>
module attributes {stable_mosaic.version = 11 : i64} {
  func.func @_ffm_pool_kernel(%arg0: i32, %arg1: i32, %arg2: memref<1x256x8xbf16, #tpu.memory_space<vmem>>, %arg3: memref<1x256x8xbf16, #tpu.memory_space<vmem>>, %arg4: memref<8x128xbf16, #tpu.memory_space<vmem>>, %arg5: memref<8x128xbf16, #tpu.memory_space<vmem>>, %arg6: memref<1x128xf32, #tpu.memory_space<vmem>>, %arg7: memref<1x128xf32, #tpu.memory_space<vmem>>, %arg8: memref<1x1x128xf32, #tpu.memory_space<vmem>>) attributes {dimension_semantics = [#tpu.dimension_semantics<parallel>, #tpu.dimension_semantics<arbitrary>], iteration_bounds = array<i64: 2, 1>, scalar_prefetch = 0 : i64, scratch_operands = 0 : i64, tpu.core_type = #tpu.core_type<tc>, window_params = [{transform_indices = @transform_0, window_bounds = array<i64: 1, 256, 8>}, {transform_indices = @transform_1, window_bounds = array<i64: 1, 256, 8>}, {pipeline_mode = #tpu.pipeline_mode<synchronous>, transform_indices = @transform_2, window_bounds = array<i64: 8, 128>}, {pipeline_mode = #tpu.pipeline_mode<synchronous>, transform_indices = @transform_3, window_bounds = array<i64: 8, 128>}, {pipeline_mode = #tpu.pipeline_mode<synchronous>, transform_indices = @transform_4, window_bounds = array<i64: 1, 128>}, {pipeline_mode = #tpu.pipeline_mode<synchronous>, transform_indices = @transform_5, window_bounds = array<i64: 1, 128>}, {transform_indices = @transform_6, window_bounds = array<i64: 1, 1, 128>}]} {
    %c0 = arith.constant 0 : index
    %c0_0 = arith.constant 0 : index
    %c0_1 = arith.constant 0 : index
    %0 = vector.load %arg2[%c0, %c0_0, %c0_1] : memref<1x256x8xbf16, #tpu.memory_space<vmem>>, vector<1x256x8xbf16>
    %1 = vector.shape_cast %0 : vector<1x256x8xbf16> to vector<256x8xbf16>
    %c0_2 = arith.constant 0 : index
    %c0_3 = arith.constant 0 : index
    %2 = vector.load %arg4[%c0_2, %c0_3] : memref<8x128xbf16, #tpu.memory_space<vmem>>, vector<8x128xbf16>
    %cst = arith.constant dense<0.000000e+00> : vector<256x128xf32>
    %3 = tpu.matmul %1, %2, %cst {dimension_numbers = #tpu.dot_dimension_numbers<[1], [0], [0], [1], [0, 0, 1, 1], [], []>} : vector<256x8xbf16>, vector<8x128xbf16>, vector<256x128xf32> -> vector<256x128xf32>
    %c0_4 = arith.constant 0 : index
    %c0_5 = arith.constant 0 : index
    %c0_6 = arith.constant 0 : index
    %4 = vector.load %arg3[%c0_4, %c0_5, %c0_6] : memref<1x256x8xbf16, #tpu.memory_space<vmem>>, vector<1x256x8xbf16>
    %5 = vector.shape_cast %4 : vector<1x256x8xbf16> to vector<256x8xbf16>
    %c0_7 = arith.constant 0 : index
    %c0_8 = arith.constant 0 : index
    %6 = vector.load %arg5[%c0_7, %c0_8] : memref<8x128xbf16, #tpu.memory_space<vmem>>, vector<8x128xbf16>
    %cst_9 = arith.constant dense<0.000000e+00> : vector<256x128xf32>
    %7 = tpu.matmul %5, %6, %cst_9 {dimension_numbers = #tpu.dot_dimension_numbers<[1], [0], [0], [1], [0, 0, 1, 1], [], []>} : vector<256x8xbf16>, vector<8x128xbf16>, vector<256x128xf32> -> vector<256x128xf32>
    %8 = arith.addf %3, %7 : vector<256x128xf32>
    %c0_10 = arith.constant 0 : index
    %c0_11 = arith.constant 0 : index
    %9 = vector.load %arg6[%c0_10, %c0_11] : memref<1x128xf32, #tpu.memory_space<vmem>>, vector<1x128xf32>
    %10 = vector.broadcast %9 : vector<1x128xf32> to vector<256x128xf32>
    %11 = arith.mulf %8, %10 : vector<256x128xf32>
    %c0_12 = arith.constant 0 : index
    %c0_13 = arith.constant 0 : index
    %12 = vector.load %arg7[%c0_12, %c0_13] : memref<1x128xf32, #tpu.memory_space<vmem>>, vector<1x128xf32>
    %13 = vector.broadcast %12 : vector<1x128xf32> to vector<256x128xf32>
    %14 = arith.addf %11, %13 : vector<256x128xf32>
    %cst_14 = arith.constant 0.000000e+00 : f32
    %15 = vector.broadcast %cst_14 : f32 to vector<256x128xf32>
    %16 = arith.maximumf %14, %15 : vector<256x128xf32>
    %c0_i32 = arith.constant 0 : i32
    %17 = arith.cmpi eq, %arg1, %c0_i32 : i32
    %18 = arith.extui %17 : i1 to i32
    %c0_i32_15 = arith.constant 0 : i32
    %19 = arith.cmpi ne, %18, %c0_i32_15 : i32
    scf.if %19 {
      %cst_23 = arith.constant 0.000000e+00 : f32
      %28 = vector.broadcast %cst_23 : f32 to vector<1x128xf32>
      %c0_24 = arith.constant 0 : index
      %c0_25 = arith.constant 0 : index
      %c0_26 = arith.constant 0 : index
      %29 = vector.load %arg8[%c0_24, %c0_25, %c0_26] : memref<1x1x128xf32, #tpu.memory_space<vmem>>, vector<1x1x128xf32>
      %30 = vector.shape_cast %29 : vector<1x1x128xf32> to vector<1x128xf32>
      %31 = vector.shape_cast %28 : vector<1x128xf32> to vector<1x1x128xf32>
      tpu.vector_store %arg8[%c0_24, %c0_25, %c0_26], %31 {strides = array<i32>} : memref<1x1x128xf32, #tpu.memory_space<vmem>>, vector<1x1x128xf32>,
    } else {
    }
    %c0_16 = arith.constant 0 : index
    %c0_17 = arith.constant 0 : index
    %c0_18 = arith.constant 0 : index
    %20 = vector.load %arg8[%c0_16, %c0_17, %c0_18] : memref<1x1x128xf32, #tpu.memory_space<vmem>>, vector<1x1x128xf32>
    %21 = vector.shape_cast %20 : vector<1x1x128xf32> to vector<1x128xf32>
    %cst_19 = arith.constant dense<0.000000e+00> : vector<128xf32>
    %22 = vector.multi_reduction <add>, %16, %cst_19 [0] : vector<256x128xf32> to vector<128xf32>
    %23 = vector.shape_cast %22 : vector<128xf32> to vector<1x128xf32>
    %24 = arith.addf %21, %23 : vector<1x128xf32>
    %c0_20 = arith.constant 0 : index
    %c0_21 = arith.constant 0 : index
    %c0_22 = arith.constant 0 : index
    %25 = vector.load %arg8[%c0_20, %c0_21, %c0_22] : memref<1x1x128xf32, #tpu.memory_space<vmem>>, vector<1x1x128xf32>
    %26 = vector.shape_cast %25 : vector<1x1x128xf32> to vector<1x128xf32>
    %27 = vector.shape_cast %24 : vector<1x128xf32> to vector<1x1x128xf32>
    tpu.vector_store %arg8[%c0_20, %c0_21, %c0_22], %27 {strides = array<i32>} : memref<1x1x128xf32, #tpu.memory_space<vmem>>, vector<1x1x128xf32>,
    return
  }
  func.func @transform_0(%arg0: i32, %arg1: i32) -> (i32, i32, i32) {
    %c0_i32 = arith.constant 0 : i32
    %c0_i32_0 = arith.constant 0 : i32
    return %arg0, %arg1, %c0_i32 : i32, i32, i32
  }
  func.func @transform_1(%arg0: i32, %arg1: i32) -> (i32, i32, i32) {
    %c0_i32 = arith.constant 0 : i32
    %c0_i32_0 = arith.constant 0 : i32
    return %arg0, %arg1, %c0_i32 : i32, i32, i32
  }
  func.func @transform_2(%arg0: i32, %arg1: i32) -> (i32, i32) {
    %c0_i32 = arith.constant 0 : i32
    %c0_i32_0 = arith.constant 0 : i32
    %c0_i32_1 = arith.constant 0 : i32
    return %c0_i32, %c0_i32_0 : i32, i32
  }
  func.func @transform_3(%arg0: i32, %arg1: i32) -> (i32, i32) {
    %c0_i32 = arith.constant 0 : i32
    %c0_i32_0 = arith.constant 0 : i32
    %c0_i32_1 = arith.constant 0 : i32
    return %c0_i32, %c0_i32_0 : i32, i32
  }
  func.func @transform_4(%arg0: i32, %arg1: i32) -> (i32, i32) {
    %c0_i32 = arith.constant 0 : i32
    %c0_i32_0 = arith.constant 0 : i32
    %c0_i32_1 = arith.constant 0 : i32
    return %c0_i32, %c0_i32_0 : i32, i32
  }
  func.func @transform_5(%arg0: i32, %arg1: i32) -> (i32, i32) {
    %c0_i32 = arith.constant 0 : i32
    %c0_i32_0 = arith.constant 0 : i32
    %c0_i32_1 = arith.constant 0 : i32
    return %c0_i32, %c0_i32_0 : i32, i32
  }
  func.func @transform_6(%arg0: i32, %arg1: i32) -> (i32, i32, i32) {
    %c0_i32 = arith.constant 0 : i32
    %c0_i32_0 = arith.constant 0 : i32
    %c0_i32_1 = arith.constant 0 : i32
    return %arg0, %c0_i32, %c0_i32_0 : i32, i32, i32
  }
}

</mosaic_0001>

<llo_original>
// kernel: tpu_custom_call.1
$region0: #{tpu_custom_call.1}
  #allocation0 [shape = 'u32[]', space=smem, size = 0x4, offset = 0x4, fixed_abs, tag = 'smem constant byte address 0x4 - core index']
  #allocation1 [shape = 'u32[144,128]{1,0:T(1,128)}', space=vmem, size = 0x12000, scoped, tag = 'internal scratch']
  %s0 = inlined_call_operand.vmem [shape: bf16[2,256,8], index: 0, kind: input, shape index: {}]
  %s1 = inlined_call_operand.vmem [shape: bf16[2,256,8], index: 1, kind: input, shape index: {}]
  %s2 = inlined_call_operand.vmem [shape: bf16[8,128], index: 2, kind: input, shape index: {}]
  %s3 = inlined_call_operand.vmem [shape: bf16[8,128], index: 3, kind: input, shape index: {}]
  %s4 = inlined_call_operand.vmem [shape: f32[1,128], index: 4, kind: input, shape index: {}]
  %s5 = inlined_call_operand.vmem [shape: f32[1,128], index: 5, kind: input, shape index: {}]
  %s6 = inlined_call_operand.hbm [shape: f32[2,1,128], index: 6, kind: output, shape index: {}]
  %s7 = sld [smem:[#allocation0]]
  $region61: #{tpu_custom_call.1} parent=0
    _
  %s9 = ssub.s32 1, %s7
  %s10 = scalar_select 0, %s9, %s7
  $region1: #{tpu_custom_call.1} parent=0
    #allocation2 [shape = 'u8[1024]{0}', space=vmem, size = 0x400, scoped, tag = 'output window, operand 0']
    #allocation3 [shape = 's32[2]{0}', space=sflag, size = 0x8, scoped, tag = 'scoped memory for tpu_custom_call.1']
    %11 = vsyncpa [#allocation3], 0
    %s12 = scalar_lea.sflag [#allocation3], 1
    %13 = vsyncpa %s12, 0
    loop: start=0, step=1, limit=4
    $region2: #{tpu_custom_call.1} parent=1 // loop_pre_header
      _
    $region3: #{tpu_custom_call.1} parent=1 // loop_header
      %s15 = sphi 0, %s19
      %p16 = scmp.ge.s32.totalorder %s15, 4
      %s22 = sphi 0, %s34
      %s23 = sphi 0, %s30
      %s24 = sphi 0, %s22
      %s25 = sphi 0, %s23
      %s26 = sphi 0, %s24
      %s27 = sphi 0, %s25
      %s39 = sphi 0, %s41
      %s42 = sphi 0, %s39
      %s43 = sphi 0, %s42
      %s59 = sphi 0, %s43
      %s67 = sphi 0, %s69
      %s70 = sphi 0, %s67
      %s71 = sphi 0, %s70
      %s87 = sphi 0, %s71
      %s91 = sphi 0, %s91
      %s93 = sphi 0, %s91
      %s94 = sphi 0, %s93
      %s108 = sphi 0, %s94
      %s112 = sphi 0, %s112
      %s114 = sphi 0, %s112
      %s115 = sphi 0, %s114
      %s129 = sphi 0, %s115
      %s133 = sphi 0, %s133
      %s135 = sphi 0, %s133
      %s136 = sphi 0, %s135
      %s150 = sphi 0, %s136
      %s154 = sphi 0, %s154
      %s156 = sphi 0, %s154
      %s157 = sphi 0, %s156
      %s171 = sphi 0, %s157
      %s177 = sphi 0, %s179
      %s180 = sphi 0, %s177
      %s181 = sphi 0, %s180
      %s197 = sphi 0, %s181
    $region4: #{tpu_custom_call.1} parent=1 // loop_header_branch
      %18 = sbr.rel (%p16) target = $region8
    $region5: #{tpu_custom_call.1} parent=1 // loop_body
      %s20 = ssub.s32 %s15, 1
      %s21 = ssub.s32 %s15, 2
      %s28 = sadd.s32 1, %s23
      %p29 = scmp.ge.s32.totalorder %s28, 1
      %s30 = scalar_select %p29, 0, %s28
      %s31 = sadd.s32 1, %s22
      %s32 = scalar_select %p29, %s31, %s22
      %p33 = scmp.ge.s32.totalorder %s32, 2
      %s34 = scalar_select %p33, 0, %s32
      %s35 = ssub.s32 %s22, %s34
      %s36 = ssub.s32 %s23, %s30
      %s37 = sor.u32 %s35, %s36
      %p38 = scmp.eq.s32.totalorder %s37, 0
      %s40 = sadd.s32 %s39, 1
      %s41 = scalar_select %p38, %s39, %s40
      %p44 = pneg %p38
      %p45 = scmp.eq.s32.totalorder %s15, 1
      %p46 = por %p44, %p45
      %p47 = scmp.ne.s32.totalorder %s39, %s42
      %p48 = scmp.eq.s32.totalorder %s15, 0
      %p49 = por %p47, %p48
      %p50 = scmp.ne.s32.totalorder %s39, %s42
      %p51 = scmp.eq.s32.totalorder %s20, 1
      %p52 = por %p50, %p51
      %p53 = scmp.ne.s32.totalorder %s42, %s43
      %p54 = scmp.eq.s32.totalorder %s20, 0
      %p55 = por %p53, %p54
      %p56 = scmp.ne.s32.totalorder %s42, %s43
      %p57 = scmp.eq.s32.totalorder %s21, 1
      %p58 = por %p56, %p57
      %p60 = scmp.ne.s32.totalorder %s43, %s59
      %p61 = scmp.eq.s32.totalorder %s21, 0
      %p62 = por %p60, %p61
      %s63 = ssub.s32 %s22, %s34
      %s64 = ssub.s32 %s23, %s30
      %s65 = sor.u32 %s63, %s64
      %p66 = scmp.eq.s32.totalorder %s65, 0
      %s68 = sadd.s32 %s67, 1
      %s69 = scalar_select %p66, %s67, %s68
      %p72 = pneg %p66
      %p73 = scmp.eq.s32.totalorder %s15, 1
      %p74 = por %p72, %p73
      %p75 = scmp.ne.s32.totalorder %s67, %s70
      %p76 = scmp.eq.s32.totalorder %s15, 0
      %p77 = por %p75, %p76
      %p78 = scmp.ne.s32.totalorder %s67, %s70
      %p79 = scmp.eq.s32.totalorder %s20, 1
      %p80 = por %p78, %p79
      %p81 = scmp.ne.s32.totalorder %s70, %s71
      %p82 = scmp.eq.s32.totalorder %s20, 0
      %p83 = por %p81, %p82
      %p84 = scmp.ne.s32.totalorder %s70, %s71
      %p85 = scmp.eq.s32.totalorder %s21, 1
      %p86 = por %p84, %p85
      %p88 = scmp.ne.s32.totalorder %s71, %s87
      %p89 = scmp.eq.s32.totalorder %s21, 0
      %p90 = por %p88, %p89
      %s92 = sadd.s32 %s91, 1
      %p95 = scmp.eq.s32.totalorder %s15, 1
      %p96 = scmp.ne.s32.totalorder %s91, %s93
      %p97 = scmp.eq.s32.totalorder %s15, 0
      %p98 = por %p96, %p97
      %p99 = scmp.ne.s32.totalorder %s91, %s93
      %p100 = scmp.eq.s32.totalorder %s20, 1
      %p101 = por %p99, %p100
      %p102 = scmp.ne.s32.totalorder %s93, %s94
      %p103 = scmp.eq.s32.totalorder %s20, 0
      %p104 = por %p102, %p103
      %p105 = scmp.ne.s32.totalorder %s93, %s94
      %p106 = scmp.eq.s32.totalorder %s21, 1
      %p107 = por %p105, %p106
      %p109 = scmp.ne.s32.totalorder %s94, %s108
      %p110 = scmp.eq.s32.totalorder %s21, 0
      %p111 = por %p109, %p110
      %s113 = sadd.s32 %s112, 1
      %p116 = scmp.eq.s32.totalorder %s15, 1
      %p117 = scmp.ne.s32.totalorder %s112, %s114
      %p118 = scmp.eq.s32.totalorder %s15, 0
      %p119 = por %p117, %p118
      %p120 = scmp.ne.s32.totalorder %s112, %s114
      %p121 = scmp.eq.s32.totalorder %s20, 1
      %p122 = por %p120, %p121
      %p123 = scmp.ne.s32.totalorder %s114, %s115
      %p124 = scmp.eq.s32.totalorder %s20, 0
      %p125 = por %p123, %p124
      %p126 = scmp.ne.s32.totalorder %s114, %s115
      %p127 = scmp.eq.s32.totalorder %s21, 1
      %p128 = por %p126, %p127
      %p130 = scmp.ne.s32.totalorder %s115, %s129
      %p131 = scmp.eq.s32.totalorder %s21, 0
      %p132 = por %p130, %p131
      %s134 = sadd.s32 %s133, 1
      %p137 = scmp.eq.s32.totalorder %s15, 1
      %p138 = scmp.ne.s32.totalorder %s133, %s135
      %p139 = scmp.eq.s32.totalorder %s15, 0
      %p140 = por %p138, %p139
      %p141 = scmp.ne.s32.totalorder %s133, %s135
      %p142 = scmp.eq.s32.totalorder %s20, 1
      %p143 = por %p141, %p142
      %p144 = scmp.ne.s32.totalorder %s135, %s136
      %p145 = scmp.eq.s32.totalorder %s20, 0
      %p146 = por %p144, %p145
      %p147 = scmp.ne.s32.totalorder %s135, %s136
      %p148 = scmp.eq.s32.totalorder %s21, 1
      %p149 = por %p147, %p148
      %p151 = scmp.ne.s32.totalorder %s136, %s150
      %p152 = scmp.eq.s32.totalorder %s21, 0
      %p153 = por %p151, %p152
      %s155 = sadd.s32 %s154, 1
      %p158 = scmp.eq.s32.totalorder %s15, 1
      %p159 = scmp.ne.s32.totalorder %s154, %s156
      %p160 = scmp.eq.s32.totalorder %s15, 0
      %p161 = por %p159, %p160
      %p162 = scmp.ne.s32.totalorder %s154, %s156
      %p163 = scmp.eq.s32.totalorder %s20, 1
      %p164 = por %p162, %p163
      %p165 = scmp.ne.s32.totalorder %s156, %s157
      %p166 = scmp.eq.s32.totalorder %s20, 0
      %p167 = por %p165, %p166
      %p168 = scmp.ne.s32.totalorder %s156, %s157
      %p169 = scmp.eq.s32.totalorder %s21, 1
      %p170 = por %p168, %p169
      %p172 = scmp.ne.s32.totalorder %s157, %s171
      %p173 = scmp.eq.s32.totalorder %s21, 0
      %p174 = por %p172, %p173
      %s175 = ssub.s32 %s22, %s34
      %p176 = scmp.eq.s32.totalorder %s175, 0
      %s178 = sadd.s32 %s177, 1
      %s179 = scalar_select %p176, %s177, %s178
      %p182 = pneg %p176
      %p183 = scmp.eq.s32.totalorder %s15, 1
      %p184 = por %p182, %p183
      %p185 = scmp.ne.s32.totalorder %s177, %s180
      %p186 = scmp.eq.s32.totalorder %s15, 0
      %p187 = por %p185, %p186
      %p188 = scmp.ne.s32.totalorder %s177, %s180
      %p189 = scmp.eq.s32.totalorder %s20, 1
      %p190 = por %p188, %p189
      %p191 = scmp.ne.s32.totalorder %s180, %s181
      %p192 = scmp.eq.s32.totalorder %s20, 0
      %p193 = por %p191, %p192
      %p194 = scmp.ne.s32.totalorder %s180, %s181
      %p195 = scmp.eq.s32.totalorder %s21, 1
      %p196 = por %p194, %p195
      %p198 = scmp.ne.s32.totalorder %s181, %s197
      %p199 = scmp.eq.s32.totalorder %s21, 0
      %p200 = por %p198, %p199
      %p201 = scmp.le.s32.totalorder 1, %s15
      %p202 = scmp.lt.s32.totalorder %s15, 3
      %p203 = pnand %p201, %p202
      %p204 = pneg %p203
      // Predicated region
      $region9: #{tpu_custom_call.1} parent=5 // pred_check
        _
      $region10: #{tpu_custom_call.1} parent=5 // pred_check_branch
        %206 = sbr.rel (%p203) target = $region12
      $region11: #{tpu_custom_call.1} parent=5 // pred_region
        %s207 = ssub.s32 %s15, 1
        // Predicated region
        $region13: #{tpu_custom_call.1} parent=11 // pred_check
          %p208 = pneg %p104
        $region14: #{tpu_custom_call.1} parent=11 // pred_check_branch
          %210 = sbr.rel (%p208) target = $region16
        $region15: #{tpu_custom_call.1} parent=11 // pred_region
          _
        $region16: #{tpu_custom_call.1} parent=11 // pred_fallthru
          _
        // Predicated region
        $region17: #{tpu_custom_call.1} parent=11 // pred_check
          %p211 = pneg %p125
        $region18: #{tpu_custom_call.1} parent=11 // pred_check_branch
          %213 = sbr.rel (%p211) target = $region20
        $region19: #{tpu_custom_call.1} parent=11 // pred_region
          _
        $region20: #{tpu_custom_call.1} parent=11 // pred_fallthru
          _
        // Predicated region
        $region21: #{tpu_custom_call.1} parent=11 // pred_check
          %p214 = pneg %p146
        $region22: #{tpu_custom_call.1} parent=11 // pred_check_branch
          %216 = sbr.rel (%p214) target = $region24
        $region23: #{tpu_custom_call.1} parent=11 // pred_region
          _
        $region24: #{tpu_custom_call.1} parent=11 // pred_fallthru
          _
        // Predicated region
        $region25: #{tpu_custom_call.1} parent=11 // pred_check
          %p217 = pneg %p167
        $region26: #{tpu_custom_call.1} parent=11 // pred_check_branch
          %219 = sbr.rel (%p217) target = $region28
        $region27: #{tpu_custom_call.1} parent=11 // pred_region
          _
        $region28: #{tpu_custom_call.1} parent=11 // pred_fallthru
          _
      $region12: #{tpu_custom_call.1} parent=5 // pred_fallthru
        _
      %p220 = scmp.lt.s32.totalorder %s15, 2
      // Predicated region
      $region29: #{tpu_custom_call.1} parent=5 // pred_check
        %p221 = pneg %p220
      $region30: #{tpu_custom_call.1} parent=5 // pred_check_branch
        %223 = sbr.rel (%p221) target = $region32
      $region31: #{tpu_custom_call.1} parent=5 // pred_region
        // Predicated region
        $region33: #{tpu_custom_call.1} parent=31 // pred_check
          %p224 = pneg %p49
        $region34: #{tpu_custom_call.1} parent=31 // pred_check_branch
          %226 = sbr.rel (%p224) target = $region36
        $region35: #{tpu_custom_call.1} parent=31 // pred_region
          %s227 = smul.u32 32, %s23
          %p228 = scmp.lt.s32.totalorder %s22, 1
          %s229 = scalar_select %p228, %s22, 1
          %p230 = scmp.lt.s32.totalorder %s227, 31
          %s231 = scalar_select %p230, %s227, 31
          %s232 = smul.addr %s229, 32
          %s233 = sadd.s32 %s231, %s232
          %s234 = smul.addr %s233, 4
          %s235 = scalar_lea.vmem %s0, %s234
          %s236 = smul.u32 32, %s23
        $region36: #{tpu_custom_call.1} parent=31 // pred_fallthru
          _
        // Predicated region
        $region37: #{tpu_custom_call.1} parent=31 // pred_check
          %p237 = pneg %p77
        $region38: #{tpu_custom_call.1} parent=31 // pred_check_branch
          %239 = sbr.rel (%p237) target = $region40
        $region39: #{tpu_custom_call.1} parent=31 // pred_region
          %s240 = smul.u32 32, %s23
          %p241 = scmp.lt.s32.totalorder %s22, 1
          %s242 = scalar_select %p241, %s22, 1
          %p243 = scmp.lt.s32.totalorder %s240, 31
          %s244 = scalar_select %p243, %s240, 31
          %s245 = smul.addr %s242, 32
          %s246 = sadd.s32 %s244, %s245
          %s247 = smul.addr %s246, 4
          %s248 = scalar_lea.vmem %s1, %s247
          %s249 = smul.u32 32, %s23
        $region40: #{tpu_custom_call.1} parent=31 // pred_fallthru
          _
      $region32: #{tpu_custom_call.1} parent=5 // pred_fallthru
        _
      %p250 = scmp.le.s32.totalorder 1, %s15
      %p251 = scmp.lt.s32.totalorder %s15, 3
      %p252 = pnand %p250, %p251
      %p253 = pneg %p252
      // Predicated region
      $region41: #{tpu_custom_call.1} parent=5 // pred_check
        _
      $region42: #{tpu_custom_call.1} parent=5 // pred_check_branch
        %255 = sbr.rel (%p252) target = $region44
      $region43: #{tpu_custom_call.1} parent=5 // pred_region
        %s256 = ssub.s32 %s15, 1
        %s257 = smul.u32 32, %s25
        %p258 = scmp.lt.s32.totalorder %s24, 1
        %s259 = scalar_select %p258, %s24, 1
        %p260 = scmp.lt.s32.totalorder %s257, 31
        %s261 = scalar_select %p260, %s257, 31
        %s262 = smul.addr %s259, 32
        %s263 = sadd.s32 %s261, %s262
        %s264 = smul.addr %s263, 4
        %s265 = scalar_lea.vmem %s0, %s264
        %p266 = pneg %p55
        %p267 = pneg %p52
        %s268 = smul.u32 32, %s25
        %p269 = scmp.lt.s32.totalorder %s24, 1
        %s270 = scalar_select %p269, %s24, 1
        %p271 = scmp.lt.s32.totalorder %s268, 31
        %s272 = scalar_select %p271, %s268, 31
        %s273 = smul.addr %s270, 32
        %s274 = sadd.s32 %s272, %s273
        %s275 = smul.addr %s274, 4
        %s276 = scalar_lea.vmem %s1, %s275
        %p277 = pneg %p83
        %p278 = pneg %p80
        %p279 = pneg %p104
        %p280 = pneg %p101
        %p281 = pneg %p125
        %p282 = pneg %p122
        %p283 = pneg %p146
        %p284 = pneg %p143
        %p285 = pneg %p167
        %p286 = pneg %p164
        %p287 = pneg %p193
        %p288 = pneg %p190
        %s289 = sand.u32 %s180, 1
        %s290 = scalar_lea.sflag [#allocation3], %s289
        %s291 = sand.u32 %s180, 1
        %s292 = scalar_lea.vmem [#allocation2], %s291
        %s293 = smul.u32 32, %s25
        %p294 = scmp.lt.s32.totalorder %s24, 1
        %s295 = scalar_select %p294, %s24, 1
        %p296 = scmp.lt.s32.totalorder %s293, 31
        %s297 = scalar_select %p296, %s293, 31
        %s298 = smul.addr %s295, 32
        %s299 = sadd.s32 %s297, %s298
        %s300 = smul.addr %s299, 4
        %s301 = scalar_lea.vmem %s0, %s300
        %s302 = smul.u32 32, %s25
        %s303 = smul.u32 32, %s25
        %p304 = scmp.lt.s32.totalorder %s24, 1
        %s305 = scalar_select %p304, %s24, 1
        %p306 = scmp.lt.s32.totalorder %s303, 31
        %s307 = scalar_select %p306, %s303, 31
        %s308 = smul.addr %s305, 32
        %s309 = sadd.s32 %s307, %s308
        %s310 = smul.addr %s309, 4
        %s311 = scalar_lea.vmem %s1, %s310
        %s312 = smul.u32 32, %s25
        %v314 = vld [vmem:[%s301] sm:$0xf]
        %v315 = vld [vmem:[%s301 + $0x4] sm:$0xf]
        %v316 = vld [vmem:[%s301 + $0x8] sm:$0xf]
        %v317 = vld [vmem:[%s301 + $0xc] sm:$0xf]
        %v318 = vld [vmem:[%s301 + $0x10] sm:$0xf]
        %v319 = vld [vmem:[%s301 + $0x14] sm:$0xf]
        %v320 = vld [vmem:[%s301 + $0x18] sm:$0xf]
        %v321 = vld [vmem:[%s301 + $0x1c] sm:$0xf]
        %v322 = vld [vmem:[%s301 + $0x20] sm:$0xf]
        %v323 = vld [vmem:[%s301 + $0x24] sm:$0xf]
        %v324 = vld [vmem:[%s301 + $0x28] sm:$0xf]
        %v325 = vld [vmem:[%s301 + $0x2c] sm:$0xf]
        %v326 = vld [vmem:[%s301 + $0x30] sm:$0xf]
        %v327 = vld [vmem:[%s301 + $0x34] sm:$0xf]
        %v328 = vld [vmem:[%s301 + $0x38] sm:$0xf]
        %v329 = vld [vmem:[%s301 + $0x3c] sm:$0xf]
        %v330 = vld [vmem:[%s301 + $0x40] sm:$0xf]
        %v331 = vld [vmem:[%s301 + $0x44] sm:$0xf]
        %v332 = vld [vmem:[%s301 + $0x48] sm:$0xf]
        %v333 = vld [vmem:[%s301 + $0x4c] sm:$0xf]
        %v334 = vld [vmem:[%s301 + $0x50] sm:$0xf]
        %v335 = vld [vmem:[%s301 + $0x54] sm:$0xf]
        %v336 = vld [vmem:[%s301 + $0x58] sm:$0xf]
        %v337 = vld [vmem:[%s301 + $0x5c] sm:$0xf]
        %v338 = vld [vmem:[%s301 + $0x60] sm:$0xf]
        %v339 = vld [vmem:[%s301 + $0x64] sm:$0xf]
        %v340 = vld [vmem:[%s301 + $0x68] sm:$0xf]
        %v341 = vld [vmem:[%s301 + $0x6c] sm:$0xf]
        %v342 = vld [vmem:[%s301 + $0x70] sm:$0xf]
        %v343 = vld [vmem:[%s301 + $0x74] sm:$0xf]
        %v344 = vld [vmem:[%s301 + $0x78] sm:$0xf]
        %v345 = vld [vmem:[%s301 + $0x7c] sm:$0xf]
        %v346 = vld [vmem:[%s2] sm:$0xf]
        %v347 = vld [vmem:[%s311] sm:$0xf]
        %v348 = vld [vmem:[%s311 + $0x4] sm:$0xf]
        %v349 = vld [vmem:[%s311 + $0x8] sm:$0xf]
        %v350 = vld [vmem:[%s311 + $0xc] sm:$0xf]
        %v351 = vld [vmem:[%s311 + $0x10] sm:$0xf]
        %v352 = vld [vmem:[%s311 + $0x14] sm:$0xf]
        %v353 = vld [vmem:[%s311 + $0x18] sm:$0xf]
        %v354 = vld [vmem:[%s311 + $0x1c] sm:$0xf]
        %v355 = vld [vmem:[%s311 + $0x20] sm:$0xf]
        %v356 = vld [vmem:[%s311 + $0x24] sm:$0xf]
        %v357 = vld [vmem:[%s311 + $0x28] sm:$0xf]
        %v358 = vld [vmem:[%s311 + $0x2c] sm:$0xf]
        %v359 = vld [vmem:[%s311 + $0x30] sm:$0xf]
        %v360 = vld [vmem:[%s311 + $0x34] sm:$0xf]
        %v361 = vld [vmem:[%s311 + $0x38] sm:$0xf]
        %v362 = vld [vmem:[%s311 + $0x3c] sm:$0xf]
        %v363 = vld [vmem:[%s311 + $0x40] sm:$0xf]
        %v364 = vld [vmem:[%s311 + $0x44] sm:$0xf]
        %v365 = vld [vmem:[%s311 + $0x48] sm:$0xf]
        %v366 = vld [vmem:[%s311 + $0x4c] sm:$0xf]
        %v367 = vld [vmem:[%s311 + $0x50] sm:$0xf]
        %v368 = vld [vmem:[%s311 + $0x54] sm:$0xf]
        %v369 = vld [vmem:[%s311 + $0x58] sm:$0xf]
        %v370 = vld [vmem:[%s311 + $0x5c] sm:$0xf]
        %v371 = vld [vmem:[%s311 + $0x60] sm:$0xf]
        %v372 = vld [vmem:[%s311 + $0x64] sm:$0xf]
        %v373 = vld [vmem:[%s311 + $0x68] sm:$0xf]
        %v374 = vld [vmem:[%s311 + $0x6c] sm:$0xf]
        %v375 = vld [vmem:[%s311 + $0x70] sm:$0xf]
        %v376 = vld [vmem:[%s311 + $0x74] sm:$0xf]
        %v377 = vld [vmem:[%s311 + $0x78] sm:$0xf]
        %v378 = vld [vmem:[%s311 + $0x7c] sm:$0xf]
        %v379 = vld [vmem:[%s3] sm:$0xf]
        %v412 = vunpack.c.l.b16 %v347
        %v413 = vunpack.c.l.b16 %v348
        %v414 = vunpack.c.l.b16 %v349
        %v415 = vunpack.c.l.b16 %v350
        %v416 = vunpack.c.l.b16 %v351
        %v417 = vunpack.c.l.b16 %v352
        %v418 = vunpack.c.l.b16 %v353
        %v419 = vunpack.c.l.b16 %v354
        %v420 = vunpack.c.l.b16 %v355
        %v421 = vunpack.c.l.b16 %v356
        %v422 = vunpack.c.l.b16 %v357
        %v423 = vunpack.c.l.b16 %v358
        %v424 = vunpack.c.l.b16 %v359
        %v425 = vunpack.c.l.b16 %v360
        %v426 = vunpack.c.l.b16 %v361
        %v427 = vunpack.c.l.b16 %v362
        %v428 = vunpack.c.l.b16 %v363
        %v429 = vunpack.c.l.b16 %v364
        %v430 = vunpack.c.l.b16 %v365
        %v431 = vunpack.c.l.b16 %v366
        %v432 = vunpack.c.l.b16 %v367
        %v433 = vunpack.c.l.b16 %v368
        %v434 = vunpack.c.l.b16 %v369
        %v435 = vunpack.c.l.b16 %v370
        %v436 = vunpack.c.l.b16 %v371
        %v437 = vunpack.c.l.b16 %v372
        %v438 = vunpack.c.l.b16 %v373
        %v439 = vunpack.c.l.b16 %v374
        %v440 = vunpack.c.l.b16 %v375
        %v441 = vunpack.c.l.b16 %v376
        %v442 = vunpack.c.l.b16 %v377
        %v443 = vunpack.c.l.b16 %v378
        %v444 = vpack.c.b16 %v413, %v412
        %v445 = vpack.c.b16 %v415, %v414
        %v446 = vpack.c.b16 %v417, %v416
        %v447 = vpack.c.b16 %v419, %v418
        %v448 = vpack.c.b16 %v421, %v420
        %v449 = vpack.c.b16 %v423, %v422
        %v450 = vpack.c.b16 %v425, %v424
        %v451 = vpack.c.b16 %v427, %v426
        %v452 = vpack.c.b16 %v429, %v428
        %v453 = vpack.c.b16 %v431, %v430
        %v454 = vpack.c.b16 %v433, %v432
        %v455 = vpack.c.b16 %v435, %v434
        %v456 = vpack.c.b16 %v437, %v436
        %v457 = vpack.c.b16 %v439, %v438
        %v458 = vpack.c.b16 %v441, %v440
        %v459 = vpack.c.b16 %v443, %v442
        %vm460 = vcmask 64512
        %v462 = vsel %vm460, %v444, 0
        %v465 = vsel %vm460, %v445, 0
        %v468 = vsel %vm460, %v446, 0
        %v471 = vsel %vm460, %v447, 0
        %v474 = vsel %vm460, %v448, 0
        %v477 = vsel %vm460, %v449, 0
        %v480 = vsel %vm460, %v450, 0
        %v483 = vsel %vm460, %v451, 0
        %v486 = vsel %vm460, %v452, 0
        %v489 = vsel %vm460, %v453, 0
        %v492 = vsel %vm460, %v454, 0
        %v495 = vsel %vm460, %v455, 0
        %v498 = vsel %vm460, %v456, 0
        %v501 = vsel %vm460, %v457, 0
        %v504 = vsel %vm460, %v458, 0
        %v507 = vsel %vm460, %v459, 0
        %vm509 = vcmask 1043456
        %v511 = vsel %vm509, %v379, 0
        %513 = vmatprep.subr.bf16.mxu0 0
        %514 = vmatpush1.bf16.msra.mxu0 %v511
        %515 = vmatprep.subr.bf16.mxu0 0
        %516 = vmatpush1.bf16.msra.mxu0 0
        %517 = vmatprep.subr.bf16.mxu0 0
        %518 = vmatpush1.bf16.msra.mxu0 0
        %519 = vmatprep.subr.bf16.mxu0 0
        %520 = vmatpush1.bf16.msra.mxu0 0
        %521 = vmatprep.subr.bf16.mxu0 0
        %522 = vmatpush1.bf16.msra.mxu0 0
        %523 = vmatprep.subr.bf16.mxu0 0
        %524 = vmatpush1.bf16.msra.mxu0 0
        %525 = vmatprep.subr.bf16.mxu0 0
        %526 = vmatpush1.bf16.msra.mxu0 0
        %527 = vmatprep.subr.bf16.mxu0 0
        %528 = vmatpush1.bf16.msra.mxu0 0
        %529 = vmatprep.subr.bf16.mxu0 0
        %530 = vmatpush1.bf16.msra.mxu0 0
        %531 = vmatprep.subr.bf16.mxu0 0
        %532 = vmatpush1.bf16.msra.mxu0 0
        %533 = vmatprep.subr.bf16.mxu0 0
        %534 = vmatpush1.bf16.msra.mxu0 0
        %535 = vmatprep.subr.bf16.mxu0 0
        %536 = vmatpush1.bf16.msra.mxu0 0
        %537 = vmatprep.subr.bf16.mxu0 0
        %538 = vmatpush1.bf16.msra.mxu0 0
        %539 = vmatprep.subr.bf16.mxu0 0
        %540 = vmatpush1.bf16.msra.mxu0 0
        %541 = vmatprep.subr.bf16.mxu0 0
        %542 = vmatpush1.bf16.msra.mxu0 0
        %543 = vmatprep.subr.bf16.mxu0 0
        %544 = vmatpush1.bf16.msra.mxu0 0
        %545 = vmatprep.mubr.bf16.mxu0 0
        %546 = vmatmul.mubr.bf16.gmra.mrb[0].mxu0 %v462
        %v547 = vpop.f32.mrb[0].mxu0
        %v548 = vadd.f32 0.0, %v547
        %v549 = vpop.f32.mrb[0].mxu0
        %v550 = vpop.f32.mrb[0].mxu0
        %v551 = vadd.f32 0.0, %v550
        %v552 = vpop.f32.mrb[0].mxu0
        %553 = vmatprep.mubr.bf16.mxu0 0
        %554 = vmatmul.mubr.bf16.gmra.mrb[0].mxu0 %v465
        %v555 = vpop.f32.mrb[0].mxu0
        %v556 = vadd.f32 0.0, %v555
        %v557 = vpop.f32.mrb[0].mxu0
        %v558 = vpop.f32.mrb[0].mxu0
        %v559 = vadd.f32 0.0, %v558
        %v560 = vpop.f32.mrb[0].mxu0
        %561 = vmatprep.mubr.bf16.mxu0 0
        %562 = vmatmul.mubr.bf16.gmra.mrb[0].mxu0 %v468
        %v563 = vpop.f32.mrb[0].mxu0
        %v564 = vadd.f32 0.0, %v563
        %v565 = vpop.f32.mrb[0].mxu0
        %v566 = vpop.f32.mrb[0].mxu0
        %v567 = vadd.f32 0.0, %v566
        %v568 = vpop.f32.mrb[0].mxu0
        %569 = vmatprep.mubr.bf16.mxu0 0
        %570 = vmatmul.mubr.bf16.gmra.mrb[0].mxu0 %v471
        %v571 = vpop.f32.mrb[0].mxu0
        %v572 = vadd.f32 0.0, %v571
        %v573 = vpop.f32.mrb[0].mxu0
        %v574 = vpop.f32.mrb[0].mxu0
        %v575 = vadd.f32 0.0, %v574
        %v576 = vpop.f32.mrb[0].mxu0
        %577 = vmatprep.mubr.bf16.mxu0 0
        %578 = vmatmul.mubr.bf16.gmra.mrb[0].mxu0 %v474
        %v579 = vpop.f32.mrb[0].mxu0
        %v580 = vadd.f32 0.0, %v579
        %v581 = vpop.f32.mrb[0].mxu0
        %v582 = vpop.f32.mrb[0].mxu0
        %v583 = vadd.f32 0.0, %v582
        %v584 = vpop.f32.mrb[0].mxu0
        %585 = vmatprep.mubr.bf16.mxu0 0
        %586 = vmatmul.mubr.bf16.gmra.mrb[0].mxu0 %v477
        %v587 = vpop.f32.mrb[0].mxu0
        %v588 = vadd.f32 0.0, %v587
        %v589 = vpop.f32.mrb[0].mxu0
        %v590 = vpop.f32.mrb[0].mxu0
        %v591 = vadd.f32 0.0, %v590
        %v592 = vpop.f32.mrb[0].mxu0
        %593 = vmatprep.mubr.bf16.mxu0 0
        %594 = vmatmul.mubr.bf16.gmra.mrb[0].mxu0 %v480
        %v595 = vpop.f32.mrb[0].mxu0
        %v596 = vadd.f32 0.0, %v595
        %v597 = vpop.f32.mrb[0].mxu0
        %v598 = vpop.f32.mrb[0].mxu0
        %v599 = vadd.f32 0.0, %v598
        %v600 = vpop.f32.mrb[0].mxu0
        %601 = vmatprep.mubr.bf16.mxu0 0
        %602 = vmatmul.mubr.bf16.gmra.mrb[0].mxu0 %v483
        %v603 = vpop.f32.mrb[0].mxu0
        %v604 = vadd.f32 0.0, %v603
        %v605 = vpop.f32.mrb[0].mxu0
        %v606 = vpop.f32.mrb[0].mxu0
        %v607 = vadd.f32 0.0, %v606
        %v608 = vpop.f32.mrb[0].mxu0
        %609 = vmatprep.mubr.bf16.mxu0 0
        %610 = vmatmul.mubr.bf16.gmra.mrb[0].mxu0 %v486
        %v611 = vpop.f32.mrb[0].mxu0
        %v612 = vadd.f32 0.0, %v611
        %v613 = vpop.f32.mrb[0].mxu0
        %v614 = vpop.f32.mrb[0].mxu0
        %v615 = vadd.f32 0.0, %v614
        %v616 = vpop.f32.mrb[0].mxu0
        %617 = vmatprep.mubr.bf16.mxu0 0
        %618 = vmatmul.mubr.bf16.gmra.mrb[0].mxu0 %v489
        %v619 = vpop.f32.mrb[0].mxu0
        %v620 = vadd.f32 0.0, %v619
        %v621 = vpop.f32.mrb[0].mxu0
        %v622 = vpop.f32.mrb[0].mxu0
        %v623 = vadd.f32 0.0, %v622
        %v624 = vpop.f32.mrb[0].mxu0
        %625 = vmatprep.mubr.bf16.mxu0 0
        %626 = vmatmul.mubr.bf16.gmra.mrb[0].mxu0 %v492
        %v627 = vpop.f32.mrb[0].mxu0
        %v628 = vadd.f32 0.0, %v627
        %v629 = vpop.f32.mrb[0].mxu0
        %v630 = vpop.f32.mrb[0].mxu0
        %v631 = vadd.f32 0.0, %v630
        %v632 = vpop.f32.mrb[0].mxu0
        %633 = vmatprep.mubr.bf16.mxu0 0
        %634 = vmatmul.mubr.bf16.gmra.mrb[0].mxu0 %v495
        %v635 = vpop.f32.mrb[0].mxu0
        %v636 = vadd.f32 0.0, %v635
        %v637 = vpop.f32.mrb[0].mxu0
        %v638 = vpop.f32.mrb[0].mxu0
        %v639 = vadd.f32 0.0, %v638
        %v640 = vpop.f32.mrb[0].mxu0
        %641 = vmatprep.mubr.bf16.mxu0 0
        %642 = vmatmul.mubr.bf16.gmra.mrb[0].mxu0 %v498
        %v643 = vpop.f32.mrb[0].mxu0
        %v644 = vadd.f32 0.0, %v643
        %v645 = vpop.f32.mrb[0].mxu0
        %v646 = vpop.f32.mrb[0].mxu0
        %v647 = vadd.f32 0.0, %v646
        %v648 = vpop.f32.mrb[0].mxu0
        %649 = vmatprep.mubr.bf16.mxu0 0
        %650 = vmatmul.mubr.bf16.gmra.mrb[0].mxu0 %v501
        %v651 = vpop.f32.mrb[0].mxu0
        %v652 = vadd.f32 0.0, %v651
        %v653 = vpop.f32.mrb[0].mxu0
        %v654 = vpop.f32.mrb[0].mxu0
        %v655 = vadd.f32 0.0, %v654
        %v656 = vpop.f32.mrb[0].mxu0
        %657 = vmatprep.mubr.bf16.mxu0 0
        %658 = vmatmul.mubr.bf16.gmra.mrb[0].mxu0 %v504
        %v659 = vpop.f32.mrb[0].mxu0
        %v660 = vadd.f32 0.0, %v659
        %v661 = vpop.f32.mrb[0].mxu0
        %v662 = vpop.f32.mrb[0].mxu0
        %v663 = vadd.f32 0.0, %v662
        %v664 = vpop.f32.mrb[0].mxu0
        %665 = vmatprep.mubr.bf16.mxu0 0
        %666 = vmatmul.mubr.bf16.gmra.mrb[0].mxu0 %v507
        %v667 = vpop.f32.mrb[0].mxu0
        %v668 = vadd.f32 0.0, %v667
        %v669 = vpop.f32.mrb[0].mxu0
        %v670 = vpop.f32.mrb[0].mxu0
        %v671 = vadd.f32 0.0, %v670
        %v672 = vpop.f32.mrb[0].mxu0
        %673 = vdwg.mxu0
        %v706 = vunpack.c.l.b16 %v314
        %v707 = vunpack.c.l.b16 %v315
        %v708 = vunpack.c.l.b16 %v316
        %v709 = vunpack.c.l.b16 %v317
        %v710 = vunpack.c.l.b16 %v318
        %v711 = vunpack.c.l.b16 %v319
        %v712 = vunpack.c.l.b16 %v320
        %v713 = vunpack.c.l.b16 %v321
        %v714 = vunpack.c.l.b16 %v322
        %v715 = vunpack.c.l.b16 %v323
        %v716 = vunpack.c.l.b16 %v324
        %v717 = vunpack.c.l.b16 %v325
        %v718 = vunpack.c.l.b16 %v326
        %v719 = vunpack.c.l.b16 %v327
        %v720 = vunpack.c.l.b16 %v328
        %v721 = vunpack.c.l.b16 %v329
        %v722 = vunpack.c.l.b16 %v330
        %v723 = vunpack.c.l.b16 %v331
        %v724 = vunpack.c.l.b16 %v332
        %v725 = vunpack.c.l.b16 %v333
        %v726 = vunpack.c.l.b16 %v334
        %v727 = vunpack.c.l.b16 %v335
        %v728 = vunpack.c.l.b16 %v336
        %v729 = vunpack.c.l.b16 %v337
        %v730 = vunpack.c.l.b16 %v338
        %v731 = vunpack.c.l.b16 %v339
        %v732 = vunpack.c.l.b16 %v340
        %v733 = vunpack.c.l.b16 %v341
        %v734 = vunpack.c.l.b16 %v342
        %v735 = vunpack.c.l.b16 %v343
        %v736 = vunpack.c.l.b16 %v344
        %v737 = vunpack.c.l.b16 %v345
        %v738 = vpack.c.b16 %v707, %v706
        %v739 = vpack.c.b16 %v709, %v708
        %v740 = vpack.c.b16 %v711, %v710
        %v741 = vpack.c.b16 %v713, %v712
        %v742 = vpack.c.b16 %v715, %v714
        %v743 = vpack.c.b16 %v717, %v716
        %v744 = vpack.c.b16 %v719, %v718
        %v745 = vpack.c.b16 %v721, %v720
        %v746 = vpack.c.b16 %v723, %v722
        %v747 = vpack.c.b16 %v725, %v724
        %v748 = vpack.c.b16 %v727, %v726
        %v749 = vpack.c.b16 %v729, %v728
        %v750 = vpack.c.b16 %v731, %v730
        %v751 = vpack.c.b16 %v733, %v732
        %v752 = vpack.c.b16 %v735, %v734
        %v753 = vpack.c.b16 %v737, %v736
        %v755 = vsel %vm460, %v738, 0
        %v758 = vsel %vm460, %v739, 0
        %v761 = vsel %vm460, %v740, 0
        %v764 = vsel %vm460, %v741, 0
        %v767 = vsel %vm460, %v742, 0
        %v770 = vsel %vm460, %v743, 0
        %v773 = vsel %vm460, %v744, 0
        %v776 = vsel %vm460, %v745, 0
        %v779 = vsel %vm460, %v746, 0
        %v782 = vsel %vm460, %v747, 0
        %v785 = vsel %vm460, %v748, 0
        %v788 = vsel %vm460, %v749, 0
        %v791 = vsel %vm460, %v750, 0
        %v794 = vsel %vm460, %v751, 0
        %v797 = vsel %vm460, %v752, 0
        %v800 = vsel %vm460, %v753, 0
        %v803 = vsel %vm509, %v346, 0
        %805 = vmatprep.subr.bf16.mxu0 0
        %806 = vmatpush1.bf16.msra.mxu0 %v803
        %807 = vmatprep.subr.bf16.mxu0 0
        %808 = vmatpush1.bf16.msra.mxu0 0
        %809 = vmatprep.subr.bf16.mxu0 0
        %810 = vmatpush1.bf16.msra.mxu0 0
        %811 = vmatprep.subr.bf16.mxu0 0
        %812 = vmatpush1.bf16.msra.mxu0 0
        %813 = vmatprep.subr.bf16.mxu0 0
        %814 = vmatpush1.bf16.msra.mxu0 0
        %815 = vmatprep.subr.bf16.mxu0 0
        %816 = vmatpush1.bf16.msra.mxu0 0
        %817 = vmatprep.subr.bf16.mxu0 0
        %818 = vmatpush1.bf16.msra.mxu0 0
        %819 = vmatprep.subr.bf16.mxu0 0
        %820 = vmatpush1.bf16.msra.mxu0 0
        %821 = vmatprep.subr.bf16.mxu0 0
        %822 = vmatpush1.bf16.msra.mxu0 0
        %823 = vmatprep.subr.bf16.mxu0 0
        %824 = vmatpush1.bf16.msra.mxu0 0
        %825 = vmatprep.subr.bf16.mxu0 0
        %826 = vmatpush1.bf16.msra.mxu0 0
        %827 = vmatprep.subr.bf16.mxu0 0
        %828 = vmatpush1.bf16.msra.mxu0 0
        %829 = vmatprep.subr.bf16.mxu0 0
        %830 = vmatpush1.bf16.msra.mxu0 0
        %831 = vmatprep.subr.bf16.mxu0 0
        %832 = vmatpush1.bf16.msra.mxu0 0
        %833 = vmatprep.subr.bf16.mxu0 0
        %834 = vmatpush1.bf16.msra.mxu0 0
        %835 = vmatprep.subr.bf16.mxu0 0
        %836 = vmatpush1.bf16.msra.mxu0 0
        %837 = vmatprep.mubr.bf16.mxu0 0
        %838 = vmatmul.mubr.bf16.gmra.mrb[0].mxu0 %v755
        %v839 = vpop.f32.mrb[0].mxu0
        %v840 = vadd.f32 %v548, %v839
        %v841 = vpop.f32.mrb[0].mxu0
        %v842 = vpop.f32.mrb[0].mxu0
        %v843 = vadd.f32 %v551, %v842
        %v844 = vpop.f32.mrb[0].mxu0
        %845 = vmatprep.mubr.bf16.mxu0 0
        %846 = vmatmul.mubr.bf16.gmra.mrb[0].mxu0 %v758
        %v847 = vpop.f32.mrb[0].mxu0
        %v848 = vadd.f32 %v556, %v847
        %v849 = vpop.f32.mrb[0].mxu0
        %v850 = vpop.f32.mrb[0].mxu0
        %v851 = vadd.f32 %v559, %v850
        %v852 = vpop.f32.mrb[0].mxu0
        %853 = vmatprep.mubr.bf16.mxu0 0
        %854 = vmatmul.mubr.bf16.gmra.mrb[0].mxu0 %v761
        %v855 = vpop.f32.mrb[0].mxu0
        %v856 = vadd.f32 %v564, %v855
        %v857 = vpop.f32.mrb[0].mxu0
        %v858 = vpop.f32.mrb[0].mxu0
        %v859 = vadd.f32 %v567, %v858
        %v860 = vpop.f32.mrb[0].mxu0
        %861 = vmatprep.mubr.bf16.mxu0 0
        %862 = vmatmul.mubr.bf16.gmra.mrb[0].mxu0 %v764
        %v863 = vpop.f32.mrb[0].mxu0
        %v864 = vadd.f32 %v572, %v863
        %v865 = vpop.f32.mrb[0].mxu0
        %v866 = vpop.f32.mrb[0].mxu0
        %v867 = vadd.f32 %v575, %v866
        %v868 = vpop.f32.mrb[0].mxu0
        %869 = vmatprep.mubr.bf16.mxu0 0
        %870 = vmatmul.mubr.bf16.gmra.mrb[0].mxu0 %v767
        %v871 = vpop.f32.mrb[0].mxu0
        %v872 = vadd.f32 %v580, %v871
        %v873 = vpop.f32.mrb[0].mxu0
        %v874 = vpop.f32.mrb[0].mxu0
        %v875 = vadd.f32 %v583, %v874
        %v876 = vpop.f32.mrb[0].mxu0
        %877 = vmatprep.mubr.bf16.mxu0 0
        %878 = vmatmul.mubr.bf16.gmra.mrb[0].mxu0 %v770
        %v879 = vpop.f32.mrb[0].mxu0
        %v880 = vadd.f32 %v588, %v879
        %v881 = vpop.f32.mrb[0].mxu0
        %v882 = vpop.f32.mrb[0].mxu0
        %v883 = vadd.f32 %v591, %v882
        %v884 = vpop.f32.mrb[0].mxu0
        %885 = vmatprep.mubr.bf16.mxu0 0
        %886 = vmatmul.mubr.bf16.gmra.mrb[0].mxu0 %v773
        %v887 = vpop.f32.mrb[0].mxu0
        %v888 = vadd.f32 %v596, %v887
        %v889 = vpop.f32.mrb[0].mxu0
        %v890 = vpop.f32.mrb[0].mxu0
        %v891 = vadd.f32 %v599, %v890
        %v892 = vpop.f32.mrb[0].mxu0
        %893 = vmatprep.mubr.bf16.mxu0 0
        %894 = vmatmul.mubr.bf16.gmra.mrb[0].mxu0 %v776
        %v895 = vpop.f32.mrb[0].mxu0
        %v896 = vadd.f32 %v604, %v895
        %v897 = vpop.f32.mrb[0].mxu0
        %v898 = vpop.f32.mrb[0].mxu0
        %v899 = vadd.f32 %v607, %v898
        %v900 = vpop.f32.mrb[0].mxu0
        %901 = vmatprep.mubr.bf16.mxu0 0
        %902 = vmatmul.mubr.bf16.gmra.mrb[0].mxu0 %v779
        %v903 = vpop.f32.mrb[0].mxu0
        %v904 = vadd.f32 %v612, %v903
        %v905 = vpop.f32.mrb[0].mxu0
        %v906 = vpop.f32.mrb[0].mxu0
        %v907 = vadd.f32 %v615, %v906
        %v908 = vpop.f32.mrb[0].mxu0
        %909 = vmatprep.mubr.bf16.mxu0 0
        %910 = vmatmul.mubr.bf16.gmra.mrb[0].mxu0 %v782
        %v911 = vpop.f32.mrb[0].mxu0
        %v912 = vadd.f32 %v620, %v911
        %v913 = vpop.f32.mrb[0].mxu0
        %v914 = vpop.f32.mrb[0].mxu0
        %v915 = vadd.f32 %v623, %v914
        %v916 = vpop.f32.mrb[0].mxu0
        %917 = vmatprep.mubr.bf16.mxu0 0
        %918 = vmatmul.mubr.bf16.gmra.mrb[0].mxu0 %v785
        %v919 = vpop.f32.mrb[0].mxu0
        %v920 = vadd.f32 %v628, %v919
        %v921 = vpop.f32.mrb[0].mxu0
        %v922 = vpop.f32.mrb[0].mxu0
        %v923 = vadd.f32 %v631, %v922
        %v924 = vpop.f32.mrb[0].mxu0
        %925 = vmatprep.mubr.bf16.mxu0 0
        %926 = vmatmul.mubr.bf16.gmra.mrb[0].mxu0 %v788
        %v927 = vpop.f32.mrb[0].mxu0
        %v928 = vadd.f32 %v636, %v927
        %v929 = vpop.f32.mrb[0].mxu0
        %v930 = vpop.f32.mrb[0].mxu0
        %v931 = vadd.f32 %v639, %v930
        %v932 = vpop.f32.mrb[0].mxu0
        %933 = vmatprep.mubr.bf16.mxu0 0
        %934 = vmatmul.mubr.bf16.gmra.mrb[0].mxu0 %v791
        %v935 = vpop.f32.mrb[0].mxu0
        %v936 = vadd.f32 %v644, %v935
        %v937 = vpop.f32.mrb[0].mxu0
        %v938 = vpop.f32.mrb[0].mxu0
        %v939 = vadd.f32 %v647, %v938
        %v940 = vpop.f32.mrb[0].mxu0
        %941 = vmatprep.mubr.bf16.mxu0 0
        %942 = vmatmul.mubr.bf16.gmra.mrb[0].mxu0 %v794
        %v943 = vpop.f32.mrb[0].mxu0
        %v944 = vadd.f32 %v652, %v943
        %v945 = vpop.f32.mrb[0].mxu0
        %v946 = vpop.f32.mrb[0].mxu0
        %v947 = vadd.f32 %v655, %v946
        %v948 = vpop.f32.mrb[0].mxu0
        %949 = vmatprep.mubr.bf16.mxu0 0
        %950 = vmatmul.mubr.bf16.gmra.mrb[0].mxu0 %v797
        %v951 = vpop.f32.mrb[0].mxu0
        %v952 = vadd.f32 %v660, %v951
        %v953 = vpop.f32.mrb[0].mxu0
        %v954 = vpop.f32.mrb[0].mxu0
        %v955 = vadd.f32 %v663, %v954
        %v956 = vpop.f32.mrb[0].mxu0
        %957 = vmatprep.mubr.bf16.mxu0 0
        %958 = vmatmul.mubr.bf16.gmra.mrb[0].mxu0 %v800
        %v959 = vpop.f32.mrb[0].mxu0
        %v960 = vadd.f32 %v668, %v959
        %v961 = vpop.f32.mrb[0].mxu0
        %v962 = vpop.f32.mrb[0].mxu0
        %v963 = vadd.f32 %v671, %v962
        %v964 = vpop.f32.mrb[0].mxu0
        %965 = vdwg.mxu0
        %v966 = vld [vmem:[%s4] sm:$0x1]
        %v968 = vlaneseq
        %v969 = vshrl.u32 %v968, 7
        %v970 = vsub.s32 0, %v969
        %v971 = vrot.slane %v966, %v970
        %v973 = vmul.f32 %v840, %v971
        %v974 = vmul.f32 %v843, %v971
        %v975 = vmul.f32 %v848, %v971
        %v976 = vmul.f32 %v851, %v971
        %v977 = vmul.f32 %v856, %v971
        %v978 = vmul.f32 %v859, %v971
        %v979 = vmul.f32 %v864, %v971
        %v980 = vmul.f32 %v867, %v971
        %v981 = vmul.f32 %v872, %v971
        %v982 = vmul.f32 %v875, %v971
        %v983 = vmul.f32 %v880, %v971
        %v984 = vmul.f32 %v883, %v971
        %v985 = vmul.f32 %v888, %v971
        %v986 = vmul.f32 %v891, %v971
        %v987 = vmul.f32 %v896, %v971
        %v988 = vmul.f32 %v899, %v971
        %v989 = vmul.f32 %v904, %v971
        %v990 = vmul.f32 %v907, %v971
        %v991 = vmul.f32 %v912, %v971
        %v992 = vmul.f32 %v915, %v971
        %v993 = vmul.f32 %v920, %v971
        %v994 = vmul.f32 %v923, %v971
        %v995 = vmul.f32 %v928, %v971
        %v996 = vmul.f32 %v931, %v971
        %v997 = vmul.f32 %v936, %v971
        %v998 = vmul.f32 %v939, %v971
        %v999 = vmul.f32 %v944, %v971
        %v1000 = vmul.f32 %v947, %v971
        %v1001 = vmul.f32 %v952, %v971
        %v1002 = vmul.f32 %v955, %v971
        %v1003 = vmul.f32 %v960, %v971
        %v1004 = vmul.f32 %v963, %v971
        %v1005 = vld [vmem:[%s5] sm:$0x1]
        %v1007 = vlaneseq
        %v1008 = vshrl.u32 %v1007, 7
        %v1009 = vsub.s32 0, %v1008
        %v1010 = vrot.slane %v1005, %v1009
        %v1012 = vadd.f32 %v973, %v1010
        %v1013 = vadd.f32 %v974, %v1010
        %v1014 = vadd.f32 %v975, %v1010
        %v1015 = vadd.f32 %v976, %v1010
        %v1016 = vadd.f32 %v977, %v1010
        %v1017 = vadd.f32 %v978, %v1010
        %v1018 = vadd.f32 %v979, %v1010
        %v1019 = vadd.f32 %v980, %v1010
        %v1020 = vadd.f32 %v981, %v1010
        %v1021 = vadd.f32 %v982, %v1010
        %v1022 = vadd.f32 %v983, %v1010
        %v1023 = vadd.f32 %v984, %v1010
        %v1024 = vadd.f32 %v985, %v1010
        %v1025 = vadd.f32 %v986, %v1010
        %v1026 = vadd.f32 %v987, %v1010
        %v1027 = vadd.f32 %v988, %v1010
        %v1028 = vadd.f32 %v989, %v1010
        %v1029 = vadd.f32 %v990, %v1010
        %v1030 = vadd.f32 %v991, %v1010
        %v1031 = vadd.f32 %v992, %v1010
        %v1032 = vadd.f32 %v993, %v1010
        %v1033 = vadd.f32 %v994, %v1010
        %v1034 = vadd.f32 %v995, %v1010
        %v1035 = vadd.f32 %v996, %v1010
        %v1036 = vadd.f32 %v997, %v1010
        %v1037 = vadd.f32 %v998, %v1010
        %v1038 = vadd.f32 %v999, %v1010
        %v1039 = vadd.f32 %v1000, %v1010
        %v1040 = vadd.f32 %v1001, %v1010
        %v1041 = vadd.f32 %v1002, %v1010
        %v1042 = vadd.f32 %v1003, %v1010
        %v1043 = vadd.f32 %v1004, %v1010
        %v1044 = vmax.f32 %v1012, 0.0
        %v1045 = vmax.f32 %v1013, 0.0
        %v1046 = vmax.f32 %v1014, 0.0
        %v1047 = vmax.f32 %v1015, 0.0
        %v1048 = vmax.f32 %v1016, 0.0
        %v1049 = vmax.f32 %v1017, 0.0
        %v1050 = vmax.f32 %v1018, 0.0
        %v1051 = vmax.f32 %v1019, 0.0
        %v1052 = vmax.f32 %v1020, 0.0
        %v1053 = vmax.f32 %v1021, 0.0
        %v1054 = vmax.f32 %v1022, 0.0
        %v1055 = vmax.f32 %v1023, 0.0
        %v1056 = vmax.f32 %v1024, 0.0
        %v1057 = vmax.f32 %v1025, 0.0
        %v1058 = vmax.f32 %v1026, 0.0
        %v1059 = vmax.f32 %v1027, 0.0
        %v1060 = vmax.f32 %v1028, 0.0
        %v1061 = vmax.f32 %v1029, 0.0
        %v1062 = vmax.f32 %v1030, 0.0
        %v1063 = vmax.f32 %v1031, 0.0
        %v1064 = vmax.f32 %v1032, 0.0
        %v1065 = vmax.f32 %v1033, 0.0
        %v1066 = vmax.f32 %v1034, 0.0
        %v1067 = vmax.f32 %v1035, 0.0
        %v1068 = vmax.f32 %v1036, 0.0
        %v1069 = vmax.f32 %v1037, 0.0
        %v1070 = vmax.f32 %v1038, 0.0
        %v1071 = vmax.f32 %v1039, 0.0
        %v1072 = vmax.f32 %v1040, 0.0
        %v1073 = vmax.f32 %v1041, 0.0
        %v1074 = vmax.f32 %v1042, 0.0
        %v1075 = vmax.f32 %v1043, 0.0
        %p1076 = scmp.eq.s32.totalorder %s25, 0
        // Predicated region
        $region45: #{tpu_custom_call.1} parent=43 // pred_check
          %p1077 = pneg %p1076
        $region46: #{tpu_custom_call.1} parent=43 // pred_check_branch
          %1079 = sbr.rel (%p1077) target = $region48
        $region47: #{tpu_custom_call.1} parent=43 // pred_region
          %1080 = vst [vmem:[%s292] sm:$0x1] 0.0
        $region48: #{tpu_custom_call.1} parent=43 // pred_fallthru
          _
        %v1081 = vld [vmem:[%s292] sm:$0x1]
        %v1082 = vadd.f32 %v1044, %v1045
        %v1083 = vadd.f32 %v1082, %v1046
        %v1084 = vadd.f32 %v1083, %v1047
        %v1085 = vadd.f32 %v1084, %v1048
        %v1086 = vadd.f32 %v1085, %v1049
        %v1087 = vadd.f32 %v1086, %v1050
        %v1088 = vadd.f32 %v1087, %v1051
        %v1089 = vadd.f32 %v1088, %v1052
        %v1090 = vadd.f32 %v1089, %v1053
        %v1091 = vadd.f32 %v1090, %v1054
        %v1092 = vadd.f32 %v1091, %v1055
        %v1093 = vadd.f32 %v1092, %v1056
        %v1094 = vadd.f32 %v1093, %v1057
        %v1095 = vadd.f32 %v1094, %v1058
        %v1096 = vadd.f32 %v1095, %v1059
        %v1097 = vadd.f32 %v1096, %v1060
        %v1098 = vadd.f32 %v1097, %v1061
        %v1099 = vadd.f32 %v1098, %v1062
        %v1100 = vadd.f32 %v1099, %v1063
        %v1101 = vadd.f32 %v1100, %v1064
        %v1102 = vadd.f32 %v1101, %v1065
        %v1103 = vadd.f32 %v1102, %v1066
        %v1104 = vadd.f32 %v1103, %v1067
        %v1105 = vadd.f32 %v1104, %v1068
        %v1106 = vadd.f32 %v1105, %v1069
        %v1107 = vadd.f32 %v1106, %v1070
        %v1108 = vadd.f32 %v1107, %v1071
        %v1109 = vadd.f32 %v1108, %v1072
        %v1110 = vadd.f32 %v1109, %v1073
        %v1111 = vadd.f32 %v1110, %v1074
        %v1112 = vadd.f32 %v1111, %v1075
        %v1113 = vrot.slane %v1112, 4
        %v1114 = vadd.f32 %v1112, %v1113
        %v1115 = vrot.slane %v1114, 2
        %v1116 = vadd.f32 %v1114, %v1115
        %v1117 = vrot.slane %v1116, 1
        %v1118 = vadd.f32 %v1116, %v1117
        %v1119 = vadd.f32 %v1081, %v1118
        %1120 = vst [vmem:[%s292] sm:$0x1] %v1119
        %s1121 = sand.u32 %s180, 1
        %s1122 = scalar_lea.sflag [#allocation3], %s1121
        %s1123 = sand.u32 %s180, 1
        %s1124 = scalar_lea.vmem [#allocation2], %s1123
        // Predicated region
        $region49: #{tpu_custom_call.1} parent=43 // pred_check
          %p1125 = pneg %p190
        $region50: #{tpu_custom_call.1} parent=43 // pred_check_branch
          %1127 = sbr.rel (%p1125) target = $region52
        $region51: #{tpu_custom_call.1} parent=43 // pred_region
          %s1129 = ssub.s32 16, 16
          %1130 = vsyncadd %s1122, %s1129
          %s1131 = smul.addr %s24, 16
          %s1132 = scalar_lea.hbm %s6, %s1131
          %s1134 = sshll.u32 %s1124, 4
          %s1135 = int_to_ptr.vmem [resolvable:$true] %s1134
          %1137 = dma.vmem_to_hbm [thread:$0]  %s1135, 16, %s1132, %s1122
        $region52: #{tpu_custom_call.1} parent=43 // pred_fallthru
          _
      $region44: #{tpu_custom_call.1} parent=5 // pred_fallthru
        _
      %p1138 = scmp.le.s32.totalorder 2, %s15
      // Predicated region
      $region53: #{tpu_custom_call.1} parent=5 // pred_check
        %p1139 = pneg %p1138
      $region54: #{tpu_custom_call.1} parent=5 // pred_check_branch
        %1141 = sbr.rel (%p1139) target = $region56
      $region55: #{tpu_custom_call.1} parent=5 // pred_region
        %s1142 = ssub.s32 %s15, 2
        // Predicated region
        $region57: #{tpu_custom_call.1} parent=55 // pred_check
          %p1143 = pneg %p196
        $region58: #{tpu_custom_call.1} parent=55 // pred_check_branch
          %1145 = sbr.rel (%p1143) target = $region60
        $region59: #{tpu_custom_call.1} parent=55 // pred_region
          %s1146 = sand.u32 %s181, 1
          %s1147 = scalar_lea.sflag [#allocation3], %s1146
          %s1148 = sand.u32 %s181, 1
          %s1149 = scalar_lea.vmem [#allocation2], %s1148
          %1150 = dma.done %s1147, 16
        $region60: #{tpu_custom_call.1} parent=55 // pred_fallthru
          _
      $region56: #{tpu_custom_call.1} parent=5 // pred_fallthru
        _
    $region6: #{tpu_custom_call.1} parent=1 // loop_footer
      %s19 = sadd.s32 1, %s15
    $region7: #{tpu_custom_call.1} parent=1 // loop_footer_branch
      %14 = sbr.rel target = $region3
    $region8: #{tpu_custom_call.1} parent=1 // loop_exit
      _
    %1151 = vsyncpa [#allocation3], 1
    %s1152 = scalar_lea.sflag [#allocation3], 1
    %1153 = vsyncpa %s1152, 1

</llo_original>
